<compile_context>
chip_gen: v7x
topology: tpu7x:2x2x1
jax: 0.10.0
libtpu: 0.0.40
codegen_flags: <defaults>
</compile_context>

<pallas_src>
import jax
import jax.numpy as jnp
from jax.experimental import pallas as pl
from jax.experimental.pallas import tpu as pltpu

FEATURE_DIM = 32          # args.feature_dim
NUM_WPS = 8               # args.num_wps_input
NUM_PEDS = 4              # args.fixed_num_pedestrians

GOAL_IN = 2               # GoalEncoder input (env != 'iGibson')
WP_IN = 2 * NUM_WPS       # WayPointsEncoder input (16)
ACT_IN = 2                # ActionEncoder input
PED_IN = 3 * NUM_PEDS     # PedPosEncoder input (12)

TOTAL_IN = GOAL_IN + WP_IN + ACT_IN + PED_IN     # 32
HIDDEN = 4 * FEATURE_DIM                         # 128 (concat of 4 branch outputs)


def _obs_encoder_kernel(xg_ref, xw_ref, xa_ref, xp_ref,
                        w1g_ref, w1w_ref, w1a_ref, w1p_ref, b1_ref,
                        w2_ref, b2_ref, out_ref):
    f32 = jnp.float32
    # Layer 1: four branch encoders fused as a sum of row-block matmuls of the
    # block-diagonal first-layer weight.  Each w1*_ref has exact zeros outside
    # its own 32-column block, so the sum equals 4 independent branch Linears.
    h = jnp.dot(xg_ref[...], w1g_ref[...], preferred_element_type=f32)
    h = h + jnp.dot(xw_ref[...], w1w_ref[...], preferred_element_type=f32)
    h = h + jnp.dot(xa_ref[...], w1a_ref[...], preferred_element_type=f32)
    h = h + jnp.dot(xp_ref[...], w1p_ref[...], preferred_element_type=f32)
    h = jnp.maximum(h + b1_ref[...], 0.0)                         # (tb, 128)
    # Layer 2: final fc, true 32-wide output (no lane padding).
    y = jnp.dot(h, w2_ref[...], preferred_element_type=f32) + b2_ref[...]
    out_ref[...] = jnp.maximum(y, 0.0)                             # (tb, 32)


def _round_up(x, m):
    return ((x + m - 1) // m) * m


def _xla_forward(x_goal, x_wp, x_act, x_ped, packed):
    """Fused plain-XLA path (used for tiny batches where Pallas launch dominates)."""
    w1g, w1w, w1a, w1p, b1, w2, b2 = packed
    h = x_goal @ w1g + x_wp @ w1w + x_act @ w1a + x_ped @ w1p + b1
    h = jnp.maximum(h, 0.0)
    return jnp.maximum(h @ w2 + b2, 0.0)


def obs_encoder_forward(x_goal, x_wp, x_act, x_ped, packed, *,
                        tb=4096, min_pallas_rows=16):
    """packed = (w1g (2,128), w1w (16,128), w1a (2,128), w1p (12,128),
                 b1 (1,128), w2 (128,32), b2 (1,32))."""
    w1g, w1w, w1a, w1p, b1, w2, b2 = packed
    B = x_goal.shape[0]

    x_goal = x_goal.astype(jnp.float32)
    x_wp = x_wp.astype(jnp.float32)
    x_act = x_act.astype(jnp.float32)
    x_ped = x_ped.astype(jnp.float32)

    # Tiny batch (e.g. B=2 per-env-step use): pallas_call launch + DMA setup
    # dominates by orders of magnitude -> plain fused XLA matmuls.
    if B < min_pallas_rows:
        return _xla_forward(x_goal, x_wp, x_act, x_ped, packed)

    # Batch-tile selection: sublane-aligned, as large as requested, but capped
    # so the grid has >= 2 steps (real megacore split on v7x; ~0.35us extra
    # step overhead is negligible on single-TC chips).
    tb = max(8, (int(tb) // 8) * 8)
    tb = min(tb, max(8, _round_up(pl.cdiv(B, 2), 8)))
    grid = (pl.cdiv(B, tb),)

    weight_bytes = 4 * (w1g.size + w1w.size + w1a.size + w1p.size
                        + b1.size + w2.size + b2.size)
    cost = pl.CostEstimate(
        flops=2 * B * (TOTAL_IN * HIDDEN + HIDDEN * FEATURE_DIM),
        transcendentals=0,
        bytes_accessed=4 * B * (TOTAL_IN + FEATURE_DIM) + weight_bytes,
    )

    out = pl.pallas_call(
        _obs_encoder_kernel,
        out_shape=jax.ShapeDtypeStruct((B, FEATURE_DIM), jnp.float32),
        grid=grid,
        in_specs=[
            # Activations: tiled over the batch axis. Last dims equal the full
            # array dims, so the BlockSpecs are legal despite being < 128.
            pl.BlockSpec((tb, GOAL_IN), lambda i: (i, 0)),
            pl.BlockSpec((tb, WP_IN), lambda i: (i, 0)),
            pl.BlockSpec((tb, ACT_IN), lambda i: (i, 0)),
            pl.BlockSpec((tb, PED_IN), lambda i: (i, 0)),
            # Weights: constant index_map -> resident in VMEM across grid steps.
            pl.BlockSpec((GOAL_IN, HIDDEN), lambda i: (0, 0)),
            pl.BlockSpec((WP_IN, HIDDEN), lambda i: (0, 0)),
            pl.BlockSpec((ACT_IN, HIDDEN), lambda i: (0, 0)),
            pl.BlockSpec((PED_IN, HIDDEN), lambda i: (0, 0)),
            pl.BlockSpec((1, HIDDEN), lambda i: (0, 0)),
            pl.BlockSpec((HIDDEN, FEATURE_DIM), lambda i: (0, 0)),
            pl.BlockSpec((1, FEATURE_DIM), lambda i: (0, 0)),
        ],
        out_specs=pl.BlockSpec((tb, FEATURE_DIM), lambda i: (i, 0)),
        compiler_params=pltpu.CompilerParams(
            dimension_semantics=("parallel",)),      # megacore split on v7x
        cost_estimate=cost,
    )(x_goal, x_wp, x_act, x_ped, w1g, w1w, w1a, w1p, b1, w2, b2)

    return out


def _init_linear(key, in_dim, out_dim):
    """PyTorch nn.Linear default init: U(-1/sqrt(in), 1/sqrt(in)).
    Weight stored as (in, out) so forward computes x @ W (== x @ W_torch.T)."""
    kw, kb = jax.random.split(key)
    bound = 1.0 / float(in_dim) ** 0.5
    w = jax.random.uniform(kw, (in_dim, out_dim), jnp.float32, -bound, bound)
    b = jax.random.uniform(kb, (1, out_dim), jnp.float32, -bound, bound)
    return w, b


def make_params(key, dtype=jnp.float32):
    ks = jax.random.split(key, 5)
    wg, bg = _init_linear(ks[0], GOAL_IN, FEATURE_DIM)
    wwp, bwp = _init_linear(ks[1], WP_IN, FEATURE_DIM)
    wa, ba = _init_linear(ks[2], ACT_IN, FEATURE_DIM)
    wpp, bpp = _init_linear(ks[3], PED_IN, FEATURE_DIM)
    wfc, bfc = _init_linear(ks[4], HIDDEN, FEATURE_DIM)

    F = FEATURE_DIM
    # Row-blocks of the block-diagonal first-layer weight: each branch weight
    # lives in its own 32-column block; off-block columns are exact zeros.
    w1g = jnp.zeros((GOAL_IN, HIDDEN), jnp.float32).at[:, 0 * F:1 * F].set(wg)
    w1w = jnp.zeros((WP_IN, HIDDEN), jnp.float32).at[:, 1 * F:2 * F].set(wwp)
    w1a = jnp.zeros((ACT_IN, HIDDEN), jnp.float32).at[:, 2 * F:3 * F].set(wa)
    w1p = jnp.zeros((PED_IN, HIDDEN), jnp.float32).at[:, 3 * F:4 * F].set(wpp)
    b1 = jnp.concatenate([bg, bwp, ba, bpp], axis=-1)            # (1, 128)

    # Final fc, true width (no output-lane padding).
    w2 = wfc                                                     # (128, 32)
    b2 = bfc                                                     # (1, 32)

    packed = tuple(a.astype(dtype) for a in (w1g, w1w, w1a, w1p, b1, w2, b2))
    full = dict(wg=wg, bg=bg, wwp=wwp, bwp=bwp, wa=wa, ba=ba, wpp=wpp, bpp=bpp,
                wfc=wfc, bfc=bfc)
    return packed, full


def reference_forward(x_goal, x_wp, x_act, x_ped, p):
    relu = lambda v: jnp.maximum(v, 0.0)
    h_g = relu(x_goal @ p["wg"] + p["bg"])
    h_w = relu(x_wp @ p["wwp"] + p["bwp"])
    h_a = relu(x_act @ p["wa"] + p["ba"])
    h_p = relu(x_ped @ p["wpp"] + p["bpp"])
    state = jnp.concatenate([h_g, h_w, h_a, h_p], axis=-1)
    return relu(state @ p["wfc"] + p["bfc"])


def _run_case(B, packed, full, key, **kw):
    k_g, k_w, k_a, k_p = jax.random.split(key, 4)
    x_goal = jax.random.normal(k_g, (B, GOAL_IN), jnp.float32)
    x_wp = jax.random.normal(k_w, (B, WP_IN), jnp.float32)
    x_act = jax.random.normal(k_a, (B, ACT_IN), jnp.float32)
    x_ped = jax.random.normal(k_p, (B, PED_IN), jnp.float32)

    out = obs_encoder_forward(x_goal, x_wp, x_act, x_ped, packed, **kw)
    out = jax.block_until_ready(out)

    ref = reference_forward(x_goal, x_wp, x_act, x_ped, full)
    assert out.shape == (B, FEATURE_DIM), out.shape
    assert jnp.allclose(out, ref, atol=1e-5, rtol=1e-5), f"mismatch vs reference (B={B})"


if __name__ == "__main__":
    key = jax.random.PRNGKey(0)
    k_par, k1, k2, k3 = jax.random.split(key, 4)

    packed, full = make_params(k_par)

    # B=2: the original per-env-step usage -> tiny-batch fused XLA path.
    _run_case(2, packed, full, k1)
    # B=64: Pallas path, 2-step grid (tile capped for the megacore split).
    _run_case(64, packed, full, k2)
    # B=300: Pallas path with a partial boundary block (no pad, no row slice).
    _run_case(300, packed, full, k3)

    print("KERNEL_OK")
</pallas_src>

<mosaic_0001>
module attributes {stable_mosaic.version = 11 : i64} {
  func.func @_obs_encoder_kernel(%arg0: i32, %arg1: memref<32x2xf32, #tpu.memory_space<vmem>>, %arg2: memref<32x16xf32, #tpu.memory_space<vmem>>, %arg3: memref<32x2xf32, #tpu.memory_space<vmem>>, %arg4: memref<32x12xf32, #tpu.memory_space<vmem>>, %arg5: memref<2x128xf32, #tpu.memory_space<vmem>>, %arg6: memref<16x128xf32, #tpu.memory_space<vmem>>, %arg7: memref<2x128xf32, #tpu.memory_space<vmem>>, %arg8: memref<12x128xf32, #tpu.memory_space<vmem>>, %arg9: memref<1x128xf32, #tpu.memory_space<vmem>>, %arg10: memref<128x32xf32, #tpu.memory_space<vmem>>, %arg11: memref<1x32xf32, #tpu.memory_space<vmem>>, %arg12: memref<32x32xf32, #tpu.memory_space<vmem>>) attributes {dimension_semantics = [#tpu.dimension_semantics<parallel>], iteration_bounds = array<i64: 2>, scalar_prefetch = 0 : i64, scratch_operands = 0 : i64, tpu.core_type = #tpu.core_type<tc>, window_params = [{transform_indices = @transform_0, window_bounds = array<i64: 32, 2>}, {transform_indices = @transform_1, window_bounds = array<i64: 32, 16>}, {transform_indices = @transform_2, window_bounds = array<i64: 32, 2>}, {transform_indices = @transform_3, window_bounds = array<i64: 32, 12>}, {pipeline_mode = #tpu.pipeline_mode<synchronous>, transform_indices = @transform_4, window_bounds = array<i64: 2, 128>}, {pipeline_mode = #tpu.pipeline_mode<synchronous>, transform_indices = @transform_5, window_bounds = array<i64: 16, 128>}, {pipeline_mode = #tpu.pipeline_mode<synchronous>, transform_indices = @transform_6, window_bounds = array<i64: 2, 128>}, {pipeline_mode = #tpu.pipeline_mode<synchronous>, transform_indices = @transform_7, window_bounds = array<i64: 12, 128>}, {pipeline_mode = #tpu.pipeline_mode<synchronous>, transform_indices = @transform_8, window_bounds = array<i64: 1, 128>}, {pipeline_mode = #tpu.pipeline_mode<synchronous>, transform_indices = @transform_9, window_bounds = array<i64: 128, 32>}, {pipeline_mode = #tpu.pipeline_mode<synchronous>, transform_indices = @transform_10, window_bounds = array<i64: 1, 32>}, {transform_indices = @transform_11, window_bounds = array<i64: 32, 32>}]} {
    %c0 = arith.constant 0 : index
    %c0_0 = arith.constant 0 : index
    %0 = vector.load %arg1[%c0, %c0_0] : memref<32x2xf32, #tpu.memory_space<vmem>>, vector<32x2xf32>
    %c0_1 = arith.constant 0 : index
    %c0_2 = arith.constant 0 : index
    %1 = vector.load %arg5[%c0_1, %c0_2] : memref<2x128xf32, #tpu.memory_space<vmem>>, vector<2x128xf32>
    %cst = arith.constant dense<0.000000e+00> : vector<32x128xf32>
    %2 = tpu.matmul %0, %1, %cst {dimension_numbers = #tpu.dot_dimension_numbers<[1], [0], [0], [1], [0, 0, 1, 1], [], []>} : vector<32x2xf32>, vector<2x128xf32>, vector<32x128xf32> -> vector<32x128xf32>
    %c0_3 = arith.constant 0 : index
    %c0_4 = arith.constant 0 : index
    %3 = vector.load %arg2[%c0_3, %c0_4] : memref<32x16xf32, #tpu.memory_space<vmem>>, vector<32x16xf32>
    %c0_5 = arith.constant 0 : index
    %c0_6 = arith.constant 0 : index
    %4 = vector.load %arg6[%c0_5, %c0_6] : memref<16x128xf32, #tpu.memory_space<vmem>>, vector<16x128xf32>
    %cst_7 = arith.constant dense<0.000000e+00> : vector<32x128xf32>
    %5 = tpu.matmul %3, %4, %cst_7 {dimension_numbers = #tpu.dot_dimension_numbers<[1], [0], [0], [1], [0, 0, 1, 1], [], []>} : vector<32x16xf32>, vector<16x128xf32>, vector<32x128xf32> -> vector<32x128xf32>
    %6 = arith.addf %2, %5 : vector<32x128xf32>
    %c0_8 = arith.constant 0 : index
    %c0_9 = arith.constant 0 : index
    %7 = vector.load %arg3[%c0_8, %c0_9] : memref<32x2xf32, #tpu.memory_space<vmem>>, vector<32x2xf32>
    %c0_10 = arith.constant 0 : index
    %c0_11 = arith.constant 0 : index
    %8 = vector.load %arg7[%c0_10, %c0_11] : memref<2x128xf32, #tpu.memory_space<vmem>>, vector<2x128xf32>
    %cst_12 = arith.constant dense<0.000000e+00> : vector<32x128xf32>
    %9 = tpu.matmul %7, %8, %cst_12 {dimension_numbers = #tpu.dot_dimension_numbers<[1], [0], [0], [1], [0, 0, 1, 1], [], []>} : vector<32x2xf32>, vector<2x128xf32>, vector<32x128xf32> -> vector<32x128xf32>
    %10 = arith.addf %6, %9 : vector<32x128xf32>
    %c0_13 = arith.constant 0 : index
    %c0_14 = arith.constant 0 : index
    %11 = vector.load %arg4[%c0_13, %c0_14] : memref<32x12xf32, #tpu.memory_space<vmem>>, vector<32x12xf32>
    %c0_15 = arith.constant 0 : index
    %c0_16 = arith.constant 0 : index
    %12 = vector.load %arg8[%c0_15, %c0_16] : memref<12x128xf32, #tpu.memory_space<vmem>>, vector<12x128xf32>
    %cst_17 = arith.constant dense<0.000000e+00> : vector<32x128xf32>
    %13 = tpu.matmul %11, %12, %cst_17 {dimension_numbers = #tpu.dot_dimension_numbers<[1], [0], [0], [1], [0, 0, 1, 1], [], []>} : vector<32x12xf32>, vector<12x128xf32>, vector<32x128xf32> -> vector<32x128xf32>
    %14 = arith.addf %10, %13 : vector<32x128xf32>
    %c0_18 = arith.constant 0 : index
    %c0_19 = arith.constant 0 : index
    %15 = vector.load %arg9[%c0_18, %c0_19] : memref<1x128xf32, #tpu.memory_space<vmem>>, vector<1x128xf32>
    %16 = vector.broadcast %15 : vector<1x128xf32> to vector<32x128xf32>
    %17 = arith.addf %14, %16 : vector<32x128xf32>
    %cst_20 = arith.constant 0.000000e+00 : f32
    %18 = vector.broadcast %cst_20 : f32 to vector<32x128xf32>
    %19 = arith.maximumf %17, %18 : vector<32x128xf32>
    %c0_21 = arith.constant 0 : index
    %c0_22 = arith.constant 0 : index
    %20 = vector.load %arg10[%c0_21, %c0_22] : memref<128x32xf32, #tpu.memory_space<vmem>>, vector<128x32xf32>
    %cst_23 = arith.constant dense<0.000000e+00> : vector<32x32xf32>
    %21 = tpu.matmul %19, %20, %cst_23 {dimension_numbers = #tpu.dot_dimension_numbers<[1], [0], [0], [1], [0, 0, 1, 1], [], []>} : vector<32x128xf32>, vector<128x32xf32>, vector<32x32xf32> -> vector<32x32xf32>
    %c0_24 = arith.constant 0 : index
    %c0_25 = arith.constant 0 : index
    %22 = vector.load %arg11[%c0_24, %c0_25] : memref<1x32xf32, #tpu.memory_space<vmem>>, vector<1x32xf32>
    %23 = vector.broadcast %22 : vector<1x32xf32> to vector<32x32xf32>
    %24 = arith.addf %21, %23 : vector<32x32xf32>
    %cst_26 = arith.constant 0.000000e+00 : f32
    %25 = vector.broadcast %cst_26 : f32 to vector<32x32xf32>
    %26 = arith.maximumf %24, %25 : vector<32x32xf32>
    %c0_27 = arith.constant 0 : index
    %c0_28 = arith.constant 0 : index
    %27 = vector.load %arg12[%c0_27, %c0_28] : memref<32x32xf32, #tpu.memory_space<vmem>>, vector<32x32xf32>
    tpu.vector_store %arg12[%c0_27, %c0_28], %26 {strides = array<i32>} : memref<32x32xf32, #tpu.memory_space<vmem>>, vector<32x32xf32>,
    return
  }
  func.func @transform_0(%arg0: i32) -> (i32, i32) {
    %c0_i32 = arith.constant 0 : i32
    %c0_i32_0 = arith.constant 0 : i32
    return %arg0, %c0_i32 : i32, i32
  }
  func.func @transform_1(%arg0: i32) -> (i32, i32) {
    %c0_i32 = arith.constant 0 : i32
    %c0_i32_0 = arith.constant 0 : i32
    return %arg0, %c0_i32 : i32, i32
  }
  func.func @transform_2(%arg0: i32) -> (i32, i32) {
    %c0_i32 = arith.constant 0 : i32
    %c0_i32_0 = arith.constant 0 : i32
    return %arg0, %c0_i32 : i32, i32
  }
  func.func @transform_3(%arg0: i32) -> (i32, i32) {
    %c0_i32 = arith.constant 0 : i32
    %c0_i32_0 = arith.constant 0 : i32
    return %arg0, %c0_i32 : i32, i32
  }
  func.func @transform_4(%arg0: i32) -> (i32, i32) {
    %c0_i32 = arith.constant 0 : i32
    %c0_i32_0 = arith.constant 0 : i32
    %c0_i32_1 = arith.constant 0 : i32
    return %c0_i32, %c0_i32_0 : i32, i32
  }
  func.func @transform_5(%arg0: i32) -> (i32, i32) {
    %c0_i32 = arith.constant 0 : i32
    %c0_i32_0 = arith.constant 0 : i32
    %c0_i32_1 = arith.constant 0 : i32
    return %c0_i32, %c0_i32_0 : i32, i32
  }
  func.func @transform_6(%arg0: i32) -> (i32, i32) {
    %c0_i32 = arith.constant 0 : i32
    %c0_i32_0 = arith.constant 0 : i32
    %c0_i32_1 = arith.constant 0 : i32
    return %c0_i32, %c0_i32_0 : i32, i32
  }
  func.func @transform_7(%arg0: i32) -> (i32, i32) {
    %c0_i32 = arith.constant 0 : i32
    %c0_i32_0 = arith.constant 0 : i32
    %c0_i32_1 = arith.constant 0 : i32
    return %c0_i32, %c0_i32_0 : i32, i32
  }
  func.func @transform_8(%arg0: i32) -> (i32, i32) {
    %c0_i32 = arith.constant 0 : i32
    %c0_i32_0 = arith.constant 0 : i32
    %c0_i32_1 = arith.constant 0 : i32
    return %c0_i32, %c0_i32_0 : i32, i32
  }
  func.func @transform_9(%arg0: i32) -> (i32, i32) {
    %c0_i32 = arith.constant 0 : i32
    %c0_i32_0 = arith.constant 0 : i32
    %c0_i32_1 = arith.constant 0 : i32
    return %c0_i32, %c0_i32_0 : i32, i32
  }
  func.func @transform_10(%arg0: i32) -> (i32, i32) {
    %c0_i32 = arith.constant 0 : i32
    %c0_i32_0 = arith.constant 0 : i32
    %c0_i32_1 = arith.constant 0 : i32
    return %c0_i32, %c0_i32_0 : i32, i32
  }
  func.func @transform_11(%arg0: i32) -> (i32, i32) {
    %c0_i32 = arith.constant 0 : i32
    %c0_i32_0 = arith.constant 0 : i32
    return %arg0, %c0_i32 : i32, i32
  }
}

</mosaic_0001>

<llo_original>
// kernel: tpu_custom_call.1
$region0: #{tpu_custom_call.1}
  #allocation0 [shape = 'u32[]', space=smem, size = 0x4, offset = 0x4, fixed_abs, tag = 'smem constant byte address 0x4 - core index']
  #allocation1 [shape = 'u32[144,128]{1,0:T(1,128)}', space=vmem, size = 0x12000, scoped, tag = 'internal scratch']
  %s0 = inlined_call_operand.vmem [shape: f32[64,2], index: 0, kind: input, shape index: {}]
  %s1 = inlined_call_operand.vmem [shape: f32[64,16], index: 1, kind: input, shape index: {}]
  %s2 = inlined_call_operand.vmem [shape: f32[64,2], index: 2, kind: input, shape index: {}]
  %s3 = inlined_call_operand.vmem [shape: f32[64,12], index: 3, kind: input, shape index: {}]
  %s4 = inlined_call_operand.vmem [shape: f32[2,128], index: 4, kind: input, shape index: {}]
  %s5 = inlined_call_operand.vmem [shape: f32[16,128], index: 5, kind: input, shape index: {}]
  %s6 = inlined_call_operand.vmem [shape: f32[2,128], index: 6, kind: input, shape index: {}]
  %s7 = inlined_call_operand.vmem [shape: f32[12,128], index: 7, kind: input, shape index: {}]
  %s8 = inlined_call_operand.vmem [shape: f32[1,128], index: 8, kind: input, shape index: {}]
  %s9 = inlined_call_operand.vmem [shape: f32[128,32], index: 9, kind: input, shape index: {}]
  %s10 = inlined_call_operand.vmem [shape: f32[1,32], index: 10, kind: input, shape index: {}]
  %s11 = inlined_call_operand.vmem [shape: f32[64,32], index: 11, kind: output, shape index: {}]
  %s12 = sld [smem:[#allocation0]]
  $region77: #{tpu_custom_call.1} parent=0
    _
  %s14 = ssub.s32 1, %s12
  %s15 = scalar_select 0, %s14, %s12
  loop: start=0, step=1, limit=4
  $region2: #{tpu_custom_call.1} parent=0 // loop_pre_header
    _
  $region3: #{tpu_custom_call.1} parent=0 // loop_header
    %s17 = sphi 0, %s21
    %p18 = scmp.ge.s32.totalorder %s17, 4
    %s27 = sphi 0, %s29
    %s30 = sphi 0, %s27
    %s31 = sphi 0, %s30
    %s47 = sphi 0, %s31
    %s53 = sphi 0, %s55
    %s56 = sphi 0, %s53
    %s57 = sphi 0, %s56
    %s73 = sphi 0, %s57
    %s79 = sphi 0, %s81
    %s82 = sphi 0, %s79
    %s83 = sphi 0, %s82
    %s99 = sphi 0, %s83
    %s105 = sphi 0, %s107
    %s108 = sphi 0, %s105
    %s109 = sphi 0, %s108
    %s125 = sphi 0, %s109
    %s129 = sphi 0, %s129
    %s131 = sphi 0, %s129
    %s132 = sphi 0, %s131
    %s146 = sphi 0, %s132
    %s150 = sphi 0, %s150
    %s152 = sphi 0, %s150
    %s153 = sphi 0, %s152
    %s167 = sphi 0, %s153
    %s171 = sphi 0, %s171
    %s173 = sphi 0, %s171
    %s174 = sphi 0, %s173
    %s188 = sphi 0, %s174
    %s192 = sphi 0, %s192
    %s194 = sphi 0, %s192
    %s195 = sphi 0, %s194
    %s209 = sphi 0, %s195
    %s213 = sphi 0, %s213
    %s215 = sphi 0, %s213
    %s216 = sphi 0, %s215
    %s230 = sphi 0, %s216
    %s234 = sphi 0, %s234
    %s236 = sphi 0, %s234
    %s237 = sphi 0, %s236
    %s251 = sphi 0, %s237
    %s255 = sphi 0, %s255
    %s257 = sphi 0, %s255
    %s258 = sphi 0, %s257
    %s272 = sphi 0, %s258
    %s278 = sphi 0, %s280
    %s281 = sphi 0, %s278
    %s282 = sphi 0, %s281
    %s298 = sphi 0, %s282
  $region4: #{tpu_custom_call.1} parent=0 // loop_header_branch
    %20 = sbr.rel (%p18) target = $region8
  $region5: #{tpu_custom_call.1} parent=0 // loop_body
    %s22 = ssub.s32 %s17, 1
    %s23 = ssub.s32 %s17, 2
    %s24 = sadd.s32 %s17, 1
    %s25 = ssub.s32 %s17, %s24
    %p26 = scmp.eq.s32.totalorder %s25, 0
    %s28 = sadd.s32 %s27, 1
    %s29 = scalar_select %p26, %s27, %s28
    %p32 = pneg %p26
    %p33 = scmp.eq.s32.totalorder %s17, 1
    %p34 = por %p32, %p33
    %p35 = scmp.ne.s32.totalorder %s27, %s30
    %p36 = scmp.eq.s32.totalorder %s17, 0
    %p37 = por %p35, %p36
    %p38 = scmp.ne.s32.totalorder %s27, %s30
    %p39 = scmp.eq.s32.totalorder %s22, 1
    %p40 = por %p38, %p39
    %p41 = scmp.ne.s32.totalorder %s30, %s31
    %p42 = scmp.eq.s32.totalorder %s22, 0
    %p43 = por %p41, %p42
    %p44 = scmp.ne.s32.totalorder %s30, %s31
    %p45 = scmp.eq.s32.totalorder %s23, 1
    %p46 = por %p44, %p45
    %p48 = scmp.ne.s32.totalorder %s31, %s47
    %p49 = scmp.eq.s32.totalorder %s23, 0
    %p50 = por %p48, %p49
    %s51 = ssub.s32 %s17, %s24
    %p52 = scmp.eq.s32.totalorder %s51, 0
    %s54 = sadd.s32 %s53, 1
    %s55 = scalar_select %p52, %s53, %s54
    %p58 = pneg %p52
    %p59 = scmp.eq.s32.totalorder %s17, 1
    %p60 = por %p58, %p59
    %p61 = scmp.ne.s32.totalorder %s53, %s56
    %p62 = scmp.eq.s32.totalorder %s17, 0
    %p63 = por %p61, %p62
    %p64 = scmp.ne.s32.totalorder %s53, %s56
    %p65 = scmp.eq.s32.totalorder %s22, 1
    %p66 = por %p64, %p65
    %p67 = scmp.ne.s32.totalorder %s56, %s57
    %p68 = scmp.eq.s32.totalorder %s22, 0
    %p69 = por %p67, %p68
    %p70 = scmp.ne.s32.totalorder %s56, %s57
    %p71 = scmp.eq.s32.totalorder %s23, 1
    %p72 = por %p70, %p71
    %p74 = scmp.ne.s32.totalorder %s57, %s73
    %p75 = scmp.eq.s32.totalorder %s23, 0
    %p76 = por %p74, %p75
    %s77 = ssub.s32 %s17, %s24
    %p78 = scmp.eq.s32.totalorder %s77, 0
    %s80 = sadd.s32 %s79, 1
    %s81 = scalar_select %p78, %s79, %s80
    %p84 = pneg %p78
    %p85 = scmp.eq.s32.totalorder %s17, 1
    %p86 = por %p84, %p85
    %p87 = scmp.ne.s32.totalorder %s79, %s82
    %p88 = scmp.eq.s32.totalorder %s17, 0
    %p89 = por %p87, %p88
    %p90 = scmp.ne.s32.totalorder %s79, %s82
    %p91 = scmp.eq.s32.totalorder %s22, 1
    %p92 = por %p90, %p91
    %p93 = scmp.ne.s32.totalorder %s82, %s83
    %p94 = scmp.eq.s32.totalorder %s22, 0
    %p95 = por %p93, %p94
    %p96 = scmp.ne.s32.totalorder %s82, %s83
    %p97 = scmp.eq.s32.totalorder %s23, 1
    %p98 = por %p96, %p97
    %p100 = scmp.ne.s32.totalorder %s83, %s99
    %p101 = scmp.eq.s32.totalorder %s23, 0
    %p102 = por %p100, %p101
    %s103 = ssub.s32 %s17, %s24
    %p104 = scmp.eq.s32.totalorder %s103, 0
    %s106 = sadd.s32 %s105, 1
    %s107 = scalar_select %p104, %s105, %s106
    %p110 = pneg %p104
    %p111 = scmp.eq.s32.totalorder %s17, 1
    %p112 = por %p110, %p111
    %p113 = scmp.ne.s32.totalorder %s105, %s108
    %p114 = scmp.eq.s32.totalorder %s17, 0
    %p115 = por %p113, %p114
    %p116 = scmp.ne.s32.totalorder %s105, %s108
    %p117 = scmp.eq.s32.totalorder %s22, 1
    %p118 = por %p116, %p117
    %p119 = scmp.ne.s32.totalorder %s108, %s109
    %p120 = scmp.eq.s32.totalorder %s22, 0
    %p121 = por %p119, %p120
    %p122 = scmp.ne.s32.totalorder %s108, %s109
    %p123 = scmp.eq.s32.totalorder %s23, 1
    %p124 = por %p122, %p123
    %p126 = scmp.ne.s32.totalorder %s109, %s125
    %p127 = scmp.eq.s32.totalorder %s23, 0
    %p128 = por %p126, %p127
    %s130 = sadd.s32 %s129, 1
    %p133 = scmp.eq.s32.totalorder %s17, 1
    %p134 = scmp.ne.s32.totalorder %s129, %s131
    %p135 = scmp.eq.s32.totalorder %s17, 0
    %p136 = por %p134, %p135
    %p137 = scmp.ne.s32.totalorder %s129, %s131
    %p138 = scmp.eq.s32.totalorder %s22, 1
    %p139 = por %p137, %p138
    %p140 = scmp.ne.s32.totalorder %s131, %s132
    %p141 = scmp.eq.s32.totalorder %s22, 0
    %p142 = por %p140, %p141
    %p143 = scmp.ne.s32.totalorder %s131, %s132
    %p144 = scmp.eq.s32.totalorder %s23, 1
    %p145 = por %p143, %p144
    %p147 = scmp.ne.s32.totalorder %s132, %s146
    %p148 = scmp.eq.s32.totalorder %s23, 0
    %p149 = por %p147, %p148
    %s151 = sadd.s32 %s150, 1
    %p154 = scmp.eq.s32.totalorder %s17, 1
    %p155 = scmp.ne.s32.totalorder %s150, %s152
    %p156 = scmp.eq.s32.totalorder %s17, 0
    %p157 = por %p155, %p156
    %p158 = scmp.ne.s32.totalorder %s150, %s152
    %p159 = scmp.eq.s32.totalorder %s22, 1
    %p160 = por %p158, %p159
    %p161 = scmp.ne.s32.totalorder %s152, %s153
    %p162 = scmp.eq.s32.totalorder %s22, 0
    %p163 = por %p161, %p162
    %p164 = scmp.ne.s32.totalorder %s152, %s153
    %p165 = scmp.eq.s32.totalorder %s23, 1
    %p166 = por %p164, %p165
    %p168 = scmp.ne.s32.totalorder %s153, %s167
    %p169 = scmp.eq.s32.totalorder %s23, 0
    %p170 = por %p168, %p169
    %s172 = sadd.s32 %s171, 1
    %p175 = scmp.eq.s32.totalorder %s17, 1
    %p176 = scmp.ne.s32.totalorder %s171, %s173
    %p177 = scmp.eq.s32.totalorder %s17, 0
    %p178 = por %p176, %p177
    %p179 = scmp.ne.s32.totalorder %s171, %s173
    %p180 = scmp.eq.s32.totalorder %s22, 1
    %p181 = por %p179, %p180
    %p182 = scmp.ne.s32.totalorder %s173, %s174
    %p183 = scmp.eq.s32.totalorder %s22, 0
    %p184 = por %p182, %p183
    %p185 = scmp.ne.s32.totalorder %s173, %s174
    %p186 = scmp.eq.s32.totalorder %s23, 1
    %p187 = por %p185, %p186
    %p189 = scmp.ne.s32.totalorder %s174, %s188
    %p190 = scmp.eq.s32.totalorder %s23, 0
    %p191 = por %p189, %p190
    %s193 = sadd.s32 %s192, 1
    %p196 = scmp.eq.s32.totalorder %s17, 1
    %p197 = scmp.ne.s32.totalorder %s192, %s194
    %p198 = scmp.eq.s32.totalorder %s17, 0
    %p199 = por %p197, %p198
    %p200 = scmp.ne.s32.totalorder %s192, %s194
    %p201 = scmp.eq.s32.totalorder %s22, 1
    %p202 = por %p200, %p201
    %p203 = scmp.ne.s32.totalorder %s194, %s195
    %p204 = scmp.eq.s32.totalorder %s22, 0
    %p205 = por %p203, %p204
    %p206 = scmp.ne.s32.totalorder %s194, %s195
    %p207 = scmp.eq.s32.totalorder %s23, 1
    %p208 = por %p206, %p207
    %p210 = scmp.ne.s32.totalorder %s195, %s209
    %p211 = scmp.eq.s32.totalorder %s23, 0
    %p212 = por %p210, %p211
    %s214 = sadd.s32 %s213, 1
    %p217 = scmp.eq.s32.totalorder %s17, 1
    %p218 = scmp.ne.s32.totalorder %s213, %s215
    %p219 = scmp.eq.s32.totalorder %s17, 0
    %p220 = por %p218, %p219
    %p221 = scmp.ne.s32.totalorder %s213, %s215
    %p222 = scmp.eq.s32.totalorder %s22, 1
    %p223 = por %p221, %p222
    %p224 = scmp.ne.s32.totalorder %s215, %s216
    %p225 = scmp.eq.s32.totalorder %s22, 0
    %p226 = por %p224, %p225
    %p227 = scmp.ne.s32.totalorder %s215, %s216
    %p228 = scmp.eq.s32.totalorder %s23, 1
    %p229 = por %p227, %p228
    %p231 = scmp.ne.s32.totalorder %s216, %s230
    %p232 = scmp.eq.s32.totalorder %s23, 0
    %p233 = por %p231, %p232
    %s235 = sadd.s32 %s234, 1
    %p238 = scmp.eq.s32.totalorder %s17, 1
    %p239 = scmp.ne.s32.totalorder %s234, %s236
    %p240 = scmp.eq.s32.totalorder %s17, 0
    %p241 = por %p239, %p240
    %p242 = scmp.ne.s32.totalorder %s234, %s236
    %p243 = scmp.eq.s32.totalorder %s22, 1
    %p244 = por %p242, %p243
    %p245 = scmp.ne.s32.totalorder %s236, %s237
    %p246 = scmp.eq.s32.totalorder %s22, 0
    %p247 = por %p245, %p246
    %p248 = scmp.ne.s32.totalorder %s236, %s237
    %p249 = scmp.eq.s32.totalorder %s23, 1
    %p250 = por %p248, %p249
    %p252 = scmp.ne.s32.totalorder %s237, %s251
    %p253 = scmp.eq.s32.totalorder %s23, 0
    %p254 = por %p252, %p253
    %s256 = sadd.s32 %s255, 1
    %p259 = scmp.eq.s32.totalorder %s17, 1
    %p260 = scmp.ne.s32.totalorder %s255, %s257
    %p261 = scmp.eq.s32.totalorder %s17, 0
    %p262 = por %p260, %p261
    %p263 = scmp.ne.s32.totalorder %s255, %s257
    %p264 = scmp.eq.s32.totalorder %s22, 1
    %p265 = por %p263, %p264
    %p266 = scmp.ne.s32.totalorder %s257, %s258
    %p267 = scmp.eq.s32.totalorder %s22, 0
    %p268 = por %p266, %p267
    %p269 = scmp.ne.s32.totalorder %s257, %s258
    %p270 = scmp.eq.s32.totalorder %s23, 1
    %p271 = por %p269, %p270
    %p273 = scmp.ne.s32.totalorder %s258, %s272
    %p274 = scmp.eq.s32.totalorder %s23, 0
    %p275 = por %p273, %p274
    %s276 = ssub.s32 %s17, %s24
    %p277 = scmp.eq.s32.totalorder %s276, 0
    %s279 = sadd.s32 %s278, 1
    %s280 = scalar_select %p277, %s278, %s279
    %p283 = pneg %p277
    %p284 = scmp.eq.s32.totalorder %s17, 1
    %p285 = por %p283, %p284
    %p286 = scmp.ne.s32.totalorder %s278, %s281
    %p287 = scmp.eq.s32.totalorder %s17, 0
    %p288 = por %p286, %p287
    %p289 = scmp.ne.s32.totalorder %s278, %s281
    %p290 = scmp.eq.s32.totalorder %s22, 1
    %p291 = por %p289, %p290
    %p292 = scmp.ne.s32.totalorder %s281, %s282
    %p293 = scmp.eq.s32.totalorder %s22, 0
    %p294 = por %p292, %p293
    %p295 = scmp.ne.s32.totalorder %s281, %s282
    %p296 = scmp.eq.s32.totalorder %s23, 1
    %p297 = por %p295, %p296
    %p299 = scmp.ne.s32.totalorder %s282, %s298
    %p300 = scmp.eq.s32.totalorder %s23, 0
    %p301 = por %p299, %p300
    %p302 = scmp.le.s32.totalorder 1, %s17
    %p303 = scmp.lt.s32.totalorder %s17, 3
    %p304 = pnand %p302, %p303
    %p305 = pneg %p304
    // Predicated region
    $region9: #{tpu_custom_call.1} parent=5 // pred_check
      _
    $region10: #{tpu_custom_call.1} parent=5 // pred_check_branch
      %307 = sbr.rel (%p304) target = $region12
    $region11: #{tpu_custom_call.1} parent=5 // pred_region
      %s308 = ssub.s32 %s17, 1
      // Predicated region
      $region13: #{tpu_custom_call.1} parent=11 // pred_check
        %p309 = pneg %p142
      $region14: #{tpu_custom_call.1} parent=11 // pred_check_branch
        %311 = sbr.rel (%p309) target = $region16
      $region15: #{tpu_custom_call.1} parent=11 // pred_region
        _
      $region16: #{tpu_custom_call.1} parent=11 // pred_fallthru
        _
      // Predicated region
      $region17: #{tpu_custom_call.1} parent=11 // pred_check
        %p312 = pneg %p163
      $region18: #{tpu_custom_call.1} parent=11 // pred_check_branch
        %314 = sbr.rel (%p312) target = $region20
      $region19: #{tpu_custom_call.1} parent=11 // pred_region
        _
      $region20: #{tpu_custom_call.1} parent=11 // pred_fallthru
        _
      // Predicated region
      $region21: #{tpu_custom_call.1} parent=11 // pred_check
        %p315 = pneg %p184
      $region22: #{tpu_custom_call.1} parent=11 // pred_check_branch
        %317 = sbr.rel (%p315) target = $region24
      $region23: #{tpu_custom_call.1} parent=11 // pred_region
        _
      $region24: #{tpu_custom_call.1} parent=11 // pred_fallthru
        _
      // Predicated region
      $region25: #{tpu_custom_call.1} parent=11 // pred_check
        %p318 = pneg %p205
      $region26: #{tpu_custom_call.1} parent=11 // pred_check_branch
        %320 = sbr.rel (%p318) target = $region28
      $region27: #{tpu_custom_call.1} parent=11 // pred_region
        _
      $region28: #{tpu_custom_call.1} parent=11 // pred_fallthru
        _
      // Predicated region
      $region29: #{tpu_custom_call.1} parent=11 // pred_check
        %p321 = pneg %p226
      $region30: #{tpu_custom_call.1} parent=11 // pred_check_branch
        %323 = sbr.rel (%p321) target = $region32
      $region31: #{tpu_custom_call.1} parent=11 // pred_region
        _
      $region32: #{tpu_custom_call.1} parent=11 // pred_fallthru
        _
      // Predicated region
      $region33: #{tpu_custom_call.1} parent=11 // pred_check
        %p324 = pneg %p247
      $region34: #{tpu_custom_call.1} parent=11 // pred_check_branch
        %326 = sbr.rel (%p324) target = $region36
      $region35: #{tpu_custom_call.1} parent=11 // pred_region
        _
      $region36: #{tpu_custom_call.1} parent=11 // pred_fallthru
        _
      // Predicated region
      $region37: #{tpu_custom_call.1} parent=11 // pred_check
        %p327 = pneg %p268
      $region38: #{tpu_custom_call.1} parent=11 // pred_check_branch
        %329 = sbr.rel (%p327) target = $region40
      $region39: #{tpu_custom_call.1} parent=11 // pred_region
        _
      $region40: #{tpu_custom_call.1} parent=11 // pred_fallthru
        _
    $region12: #{tpu_custom_call.1} parent=5 // pred_fallthru
      _
    %p330 = scmp.lt.s32.totalorder %s17, 2
    // Predicated region
    $region41: #{tpu_custom_call.1} parent=5 // pred_check
      %p331 = pneg %p330
    $region42: #{tpu_custom_call.1} parent=5 // pred_check_branch
      %333 = sbr.rel (%p331) target = $region44
    $region43: #{tpu_custom_call.1} parent=5 // pred_region
      // Predicated region
      $region45: #{tpu_custom_call.1} parent=43 // pred_check
        %p334 = pneg %p37
      $region46: #{tpu_custom_call.1} parent=43 // pred_check_branch
        %336 = sbr.rel (%p334) target = $region48
      $region47: #{tpu_custom_call.1} parent=43 // pred_region
        %s337 = smul.u32 4, %s17
        %p338 = scmp.lt.s32.totalorder %s337, 7
        %s339 = scalar_select %p338, %s337, 7
        %s340 = smul.addr %s339, 8
        %s341 = scalar_lea.vmem %s0, %s340
        %s342 = smul.u32 4, %s17
      $region48: #{tpu_custom_call.1} parent=43 // pred_fallthru
        _
      // Predicated region
      $region49: #{tpu_custom_call.1} parent=43 // pred_check
        %p343 = pneg %p63
      $region50: #{tpu_custom_call.1} parent=43 // pred_check_branch
        %345 = sbr.rel (%p343) target = $region52
      $region51: #{tpu_custom_call.1} parent=43 // pred_region
        %s346 = smul.u32 4, %s17
        %p347 = scmp.lt.s32.totalorder %s346, 7
        %s348 = scalar_select %p347, %s346, 7
        %s349 = smul.addr %s348, 8
        %s350 = scalar_lea.vmem %s1, %s349
        %s351 = smul.u32 4, %s17
      $region52: #{tpu_custom_call.1} parent=43 // pred_fallthru
        _
      // Predicated region
      $region53: #{tpu_custom_call.1} parent=43 // pred_check
        %p352 = pneg %p89
      $region54: #{tpu_custom_call.1} parent=43 // pred_check_branch
        %354 = sbr.rel (%p352) target = $region56
      $region55: #{tpu_custom_call.1} parent=43 // pred_region
        %s355 = smul.u32 4, %s17
        %p356 = scmp.lt.s32.totalorder %s355, 7
        %s357 = scalar_select %p356, %s355, 7
        %s358 = smul.addr %s357, 8
        %s359 = scalar_lea.vmem %s2, %s358
        %s360 = smul.u32 4, %s17
      $region56: #{tpu_custom_call.1} parent=43 // pred_fallthru
        _
      // Predicated region
      $region57: #{tpu_custom_call.1} parent=43 // pred_check
        %p361 = pneg %p115
      $region58: #{tpu_custom_call.1} parent=43 // pred_check_branch
        %363 = sbr.rel (%p361) target = $region60
      $region59: #{tpu_custom_call.1} parent=43 // pred_region
        %s364 = smul.u32 4, %s17
        %p365 = scmp.lt.s32.totalorder %s364, 7
        %s366 = scalar_select %p365, %s364, 7
        %s367 = smul.addr %s366, 8
        %s368 = scalar_lea.vmem %s3, %s367
        %s369 = smul.u32 4, %s17
      $region60: #{tpu_custom_call.1} parent=43 // pred_fallthru
        _
    $region44: #{tpu_custom_call.1} parent=5 // pred_fallthru
      _
    %p370 = scmp.le.s32.totalorder 1, %s17
    %p371 = scmp.lt.s32.totalorder %s17, 3
    %p372 = pnand %p370, %p371
    %p373 = pneg %p372
    // Predicated region
    $region61: #{tpu_custom_call.1} parent=5 // pred_check
      _
    $region62: #{tpu_custom_call.1} parent=5 // pred_check_branch
      %375 = sbr.rel (%p372) target = $region64
    $region63: #{tpu_custom_call.1} parent=5 // pred_region
      %s376 = ssub.s32 %s17, 1
      %s377 = smul.u32 4, %s22
      %p378 = scmp.lt.s32.totalorder %s377, 7
      %s379 = scalar_select %p378, %s377, 7
      %s380 = smul.addr %s379, 8
      %s381 = scalar_lea.vmem %s0, %s380
      %p382 = pneg %p43
      %p383 = pneg %p40
      %s384 = smul.u32 4, %s22
      %p385 = scmp.lt.s32.totalorder %s384, 7
      %s386 = scalar_select %p385, %s384, 7
      %s387 = smul.addr %s386, 8
      %s388 = scalar_lea.vmem %s1, %s387
      %p389 = pneg %p69
      %p390 = pneg %p66
      %s391 = smul.u32 4, %s22
      %p392 = scmp.lt.s32.totalorder %s391, 7
      %s393 = scalar_select %p392, %s391, 7
      %s394 = smul.addr %s393, 8
      %s395 = scalar_lea.vmem %s2, %s394
      %p396 = pneg %p95
      %p397 = pneg %p92
      %s398 = smul.u32 4, %s22
      %p399 = scmp.lt.s32.totalorder %s398, 7
      %s400 = scalar_select %p399, %s398, 7
      %s401 = smul.addr %s400, 8
      %s402 = scalar_lea.vmem %s3, %s401
      %p403 = pneg %p121
      %p404 = pneg %p118
      %p405 = pneg %p142
      %p406 = pneg %p139
      %p407 = pneg %p163
      %p408 = pneg %p160
      %p409 = pneg %p184
      %p410 = pneg %p181
      %p411 = pneg %p205
      %p412 = pneg %p202
      %p413 = pneg %p226
      %p414 = pneg %p223
      %p415 = pneg %p247
      %p416 = pneg %p244
      %p417 = pneg %p268
      %p418 = pneg %p265
      %p419 = pneg %p294
      %p420 = pneg %p291
      %s421 = smul.u32 4, %s22
      %p422 = scmp.lt.s32.totalorder %s421, 7
      %s423 = scalar_select %p422, %s421, 7
      %s424 = smul.addr %s423, 8
      %s425 = scalar_lea.vmem %s11, %s424
      %s426 = smul.u32 4, %s22
      %p427 = scmp.lt.s32.totalorder %s426, 7
      %s428 = scalar_select %p427, %s426, 7
      %s429 = smul.addr %s428, 8
      %s430 = scalar_lea.vmem %s0, %s429
      %s431 = smul.u32 4, %s22
      %s432 = smul.u32 4, %s22
      %p433 = scmp.lt.s32.totalorder %s432, 7
      %s434 = scalar_select %p433, %s432, 7
      %s435 = smul.addr %s434, 8
      %s436 = scalar_lea.vmem %s1, %s435
      %s437 = smul.u32 4, %s22
      %s438 = smul.u32 4, %s22
      %p439 = scmp.lt.s32.totalorder %s438, 7
      %s440 = scalar_select %p439, %s438, 7
      %s441 = smul.addr %s440, 8
      %s442 = scalar_lea.vmem %s2, %s441
      %s443 = smul.u32 4, %s22
      %s444 = smul.u32 4, %s22
      %p445 = scmp.lt.s32.totalorder %s444, 7
      %s446 = scalar_select %p445, %s444, 7
      %s447 = smul.addr %s446, 8
      %s448 = scalar_lea.vmem %s3, %s447
      %s449 = smul.u32 4, %s22
      %s450 = smul.u32 4, %s22
      %p451 = scmp.lt.s32.totalorder %s450, 7
      %s452 = scalar_select %p451, %s450, 7
      %s453 = smul.addr %s452, 8
      %s454 = scalar_lea.vmem %s11, %s453
      %s455 = smul.u32 4, %s22
      %v456 = vld [vmem:[%s430] sm:$0xff]
      %v457 = vld [vmem:[%s430 + $0x8] sm:$0xff]
      %v458 = vld [vmem:[%s430 + $0x10] sm:$0xff]
      %v459 = vld [vmem:[%s430 + $0x18] sm:$0xff]
      %v460 = vld [vmem:[%s4] sm:$0x3]
      %v461 = vld [vmem:[%s436] sm:$0xff]
      %v462 = vld [vmem:[%s436 + $0x8] sm:$0xff]
      %v463 = vld [vmem:[%s436 + $0x10] sm:$0xff]
      %v464 = vld [vmem:[%s436 + $0x18] sm:$0xff]
      %v465 = vld [vmem:[%s5] sm:$0xff]
      %v466 = vld [vmem:[%s5 + $0x8] sm:$0xff]
      %vm467 = vcmask 130048
      %v469 = vsel %vm467, %v461, 0
      %v472 = vsel %vm467, %v462, 0
      %v475 = vsel %vm467, %v463, 0
      %v478 = vsel %vm467, %v464, 0
      %480 = vmatprep.subr.mxu0 0.0
      %481 = vmatpush1.msra.mxu0 %v465
      %482 = vmatprep.subr.mxu0 0.0
      %483 = vmatpush1.msra.mxu0 %v466
      %484 = vmatprep.subr.mxu0 0.0
      %485 = vmatpush1.msra.mxu0 0.0
      %486 = vmatprep.subr.mxu0 0.0
      %487 = vmatpush1.msra.mxu0 0.0
      %488 = vmatprep.subr.mxu0 0.0
      %489 = vmatpush1.msra.mxu0 0.0
      %490 = vmatprep.subr.mxu0 0.0
      %491 = vmatpush1.msra.mxu0 0.0
      %492 = vmatprep.subr.mxu0 0.0
      %493 = vmatpush1.msra.mxu0 0.0
      %494 = vmatprep.subr.mxu0 0.0
      %495 = vmatpush1.msra.mxu0 0.0
      %496 = vmatprep.subr.mxu0 0.0
      %497 = vmatpush1.msra.mxu0 0.0
      %498 = vmatprep.subr.mxu0 0.0
      %499 = vmatpush1.msra.mxu0 0.0
      %500 = vmatprep.subr.mxu0 0.0
      %501 = vmatpush1.msra.mxu0 0.0
      %502 = vmatprep.subr.mxu0 0.0
      %503 = vmatpush1.msra.mxu0 0.0
      %504 = vmatprep.subr.mxu0 0.0
      %505 = vmatpush1.msra.mxu0 0.0
      %506 = vmatprep.subr.mxu0 0.0
      %507 = vmatpush1.msra.mxu0 0.0
      %508 = vmatprep.subr.mxu0 0.0
      %509 = vmatpush1.msra.mxu0 0.0
      %510 = vmatprep.subr.mxu0 0.0
      %511 = vmatpush1.msra.mxu0 0.0
      %512 = vmatprep.subr.mxu0 0.0
      %513 = vmatpush1.msra.mxu0 0.0
      %514 = vmatprep.subr.mxu0 0.0
      %515 = vmatpush1.msra.mxu0 0.0
      %516 = vmatprep.subr.mxu0 0.0
      %517 = vmatpush1.msra.mxu0 0.0
      %518 = vmatprep.subr.mxu0 0.0
      %519 = vmatpush1.msra.mxu0 0.0
      %520 = vmatprep.subr.mxu0 0.0
      %521 = vmatpush1.msra.mxu0 0.0
      %522 = vmatprep.subr.mxu0 0.0
      %523 = vmatpush1.msra.mxu0 0.0
      %524 = vmatprep.subr.mxu0 0.0
      %525 = vmatpush1.msra.mxu0 0.0
      %526 = vmatprep.subr.mxu0 0.0
      %527 = vmatpush1.msra.mxu0 0.0
      %528 = vmatprep.subr.mxu0 0.0
      %529 = vmatpush1.msra.mxu0 0.0
      %530 = vmatprep.subr.mxu0 0.0
      %531 = vmatpush1.msra.mxu0 0.0
      %532 = vmatprep.subr.mxu0 0.0
      %533 = vmatpush1.msra.mxu0 0.0
      %534 = vmatprep.subr.mxu0 0.0
      %535 = vmatpush1.msra.mxu0 0.0
      %536 = vmatprep.subr.mxu0 0.0
      %537 = vmatpush1.msra.mxu0 0.0
      %538 = vmatprep.subr.mxu0 0.0
      %539 = vmatpush1.msra.mxu0 0.0
      %540 = vmatprep.subr.mxu0 0.0
      %541 = vmatpush1.msra.mxu0 0.0
      %542 = vmatprep.subr.mxu0 0.0
      %543 = vmatpush1.msra.mxu0 0.0
      %544 = vmatprep.mubr.f32.mxu0 0.0
      %545 = vmatmul.mubr.f32.gmra.mrb[0].mxu0 %v469
      %v546 = vpop.f32.mrb[0].mxu0
      %v547 = vadd.f32 0.0, %v546
      %v548 = vpop.f32.mrb[0].mxu0
      %549 = vmatprep.mubr.f32.mxu0 0.0
      %550 = vmatmul.mubr.f32.gmra.mrb[0].mxu0 %v472
      %v551 = vpop.f32.mrb[0].mxu0
      %v552 = vadd.f32 0.0, %v551
      %v553 = vpop.f32.mrb[0].mxu0
      %554 = vmatprep.mubr.f32.mxu0 0.0
      %555 = vmatmul.mubr.f32.gmra.mrb[0].mxu0 %v475
      %v556 = vpop.f32.mrb[0].mxu0
      %v557 = vadd.f32 0.0, %v556
      %v558 = vpop.f32.mrb[0].mxu0
      %559 = vmatprep.mubr.f32.mxu0 0.0
      %560 = vmatmul.mubr.f32.gmra.mrb[0].mxu0 %v478
      %v561 = vpop.f32.mrb[0].mxu0
      %v562 = vadd.f32 0.0, %v561
      %v563 = vpop.f32.mrb[0].mxu0
      %564 = vdwg.mxu0
      %vm565 = vcmask 15360
      %v567 = vsel %vm565, %v456, 0
      %v570 = vsel %vm565, %v457, 0
      %v573 = vsel %vm565, %v458, 0
      %v576 = vsel %vm565, %v459, 0
      %vm578 = vcmask 1041408
      %v580 = vsel %vm578, %v460, 0
      %582 = vmatprep.subr.mxu0 0.0
      %583 = vmatpush1.msra.mxu0 %v580
      %584 = vmatprep.subr.mxu0 0.0
      %585 = vmatpush1.msra.mxu0 0.0
      %586 = vmatprep.subr.mxu0 0.0
      %587 = vmatpush1.msra.mxu0 0.0
      %588 = vmatprep.subr.mxu0 0.0
      %589 = vmatpush1.msra.mxu0 0.0
      %590 = vmatprep.subr.mxu0 0.0
      %591 = vmatpush1.msra.mxu0 0.0
      %592 = vmatprep.subr.mxu0 0.0
      %593 = vmatpush1.msra.mxu0 0.0
      %594 = vmatprep.subr.mxu0 0.0
      %595 = vmatpush1.msra.mxu0 0.0
      %596 = vmatprep.subr.mxu0 0.0
      %597 = vmatpush1.msra.mxu0 0.0
      %598 = vmatprep.subr.mxu0 0.0
      %599 = vmatpush1.msra.mxu0 0.0
      %600 = vmatprep.subr.mxu0 0.0
      %601 = vmatpush1.msra.mxu0 0.0
      %602 = vmatprep.subr.mxu0 0.0
      %603 = vmatpush1.msra.mxu0 0.0
      %604 = vmatprep.subr.mxu0 0.0
      %605 = vmatpush1.msra.mxu0 0.0
      %606 = vmatprep.subr.mxu0 0.0
      %607 = vmatpush1.msra.mxu0 0.0
      %608 = vmatprep.subr.mxu0 0.0
      %609 = vmatpush1.msra.mxu0 0.0
      %610 = vmatprep.subr.mxu0 0.0
      %611 = vmatpush1.msra.mxu0 0.0
      %612 = vmatprep.subr.mxu0 0.0
      %613 = vmatpush1.msra.mxu0 0.0
      %614 = vmatprep.subr.mxu0 0.0
      %615 = vmatpush1.msra.mxu0 0.0
      %616 = vmatprep.subr.mxu0 0.0
      %617 = vmatpush1.msra.mxu0 0.0
      %618 = vmatprep.subr.mxu0 0.0
      %619 = vmatpush1.msra.mxu0 0.0
      %620 = vmatprep.subr.mxu0 0.0
      %621 = vmatpush1.msra.mxu0 0.0
      %622 = vmatprep.subr.mxu0 0.0
      %623 = vmatpush1.msra.mxu0 0.0
      %624 = vmatprep.subr.mxu0 0.0
      %625 = vmatpush1.msra.mxu0 0.0
      %626 = vmatprep.subr.mxu0 0.0
      %627 = vmatpush1.msra.mxu0 0.0
      %628 = vmatprep.subr.mxu0 0.0
      %629 = vmatpush1.msra.mxu0 0.0
      %630 = vmatprep.subr.mxu0 0.0
      %631 = vmatpush1.msra.mxu0 0.0
      %632 = vmatprep.subr.mxu0 0.0
      %633 = vmatpush1.msra.mxu0 0.0
      %634 = vmatprep.subr.mxu0 0.0
      %635 = vmatpush1.msra.mxu0 0.0
      %636 = vmatprep.subr.mxu0 0.0
      %637 = vmatpush1.msra.mxu0 0.0
      %638 = vmatprep.subr.mxu0 0.0
      %639 = vmatpush1.msra.mxu0 0.0
      %640 = vmatprep.subr.mxu0 0.0
      %641 = vmatpush1.msra.mxu0 0.0
      %642 = vmatprep.subr.mxu0 0.0
      %643 = vmatpush1.msra.mxu0 0.0
      %644 = vmatprep.subr.mxu0 0.0
      %645 = vmatpush1.msra.mxu0 0.0
      %646 = vmatprep.mubr.f32.mxu0 0.0
      %647 = vmatmul.mubr.f32.gmra.mrb[0].mxu0 %v567
      %v648 = vpop.f32.mrb[0].mxu0
      %v649 = vadd.f32 %v547, %v648
      %v650 = vpop.f32.mrb[0].mxu0
      %651 = vmatprep.mubr.f32.mxu0 0.0
      %652 = vmatmul.mubr.f32.gmra.mrb[0].mxu0 %v570
      %v653 = vpop.f32.mrb[0].mxu0
      %v654 = vadd.f32 %v552, %v653
      %v655 = vpop.f32.mrb[0].mxu0
      %656 = vmatprep.mubr.f32.mxu0 0.0
      %657 = vmatmul.mubr.f32.gmra.mrb[0].mxu0 %v573
      %v658 = vpop.f32.mrb[0].mxu0
      %v659 = vadd.f32 %v557, %v658
      %v660 = vpop.f32.mrb[0].mxu0
      %661 = vmatprep.mubr.f32.mxu0 0.0
      %662 = vmatmul.mubr.f32.gmra.mrb[0].mxu0 %v576
      %v663 = vpop.f32.mrb[0].mxu0
      %v664 = vadd.f32 %v562, %v663
      %v665 = vpop.f32.mrb[0].mxu0
      %666 = vdwg.mxu0
      %v667 = vld [vmem:[%s442] sm:$0xff]
      %v668 = vld [vmem:[%s442 + $0x8] sm:$0xff]
      %v669 = vld [vmem:[%s442 + $0x10] sm:$0xff]
      %v670 = vld [vmem:[%s442 + $0x18] sm:$0xff]
      %v671 = vld [vmem:[%s6] sm:$0x3]
      %v673 = vsel %vm565, %v667, 0
      %v676 = vsel %vm565, %v668, 0
      %v679 = vsel %vm565, %v669, 0
      %v682 = vsel %vm565, %v670, 0
      %v685 = vsel %vm578, %v671, 0
      %687 = vmatprep.subr.mxu0 0.0
      %688 = vmatpush1.msra.mxu0 %v685
      %689 = vmatprep.subr.mxu0 0.0
      %690 = vmatpush1.msra.mxu0 0.0
      %691 = vmatprep.subr.mxu0 0.0
      %692 = vmatpush1.msra.mxu0 0.0
      %693 = vmatprep.subr.mxu0 0.0
      %694 = vmatpush1.msra.mxu0 0.0
      %695 = vmatprep.subr.mxu0 0.0
      %696 = vmatpush1.msra.mxu0 0.0
      %697 = vmatprep.subr.mxu0 0.0
      %698 = vmatpush1.msra.mxu0 0.0
      %699 = vmatprep.subr.mxu0 0.0
      %700 = vmatpush1.msra.mxu0 0.0
      %701 = vmatprep.subr.mxu0 0.0
      %702 = vmatpush1.msra.mxu0 0.0
      %703 = vmatprep.subr.mxu0 0.0
      %704 = vmatpush1.msra.mxu0 0.0
      %705 = vmatprep.subr.mxu0 0.0
      %706 = vmatpush1.msra.mxu0 0.0
      %707 = vmatprep.subr.mxu0 0.0
      %708 = vmatpush1.msra.mxu0 0.0
      %709 = vmatprep.subr.mxu0 0.0
      %710 = vmatpush1.msra.mxu0 0.0
      %711 = vmatprep.subr.mxu0 0.0
      %712 = vmatpush1.msra.mxu0 0.0
      %713 = vmatprep.subr.mxu0 0.0
      %714 = vmatpush1.msra.mxu0 0.0
      %715 = vmatprep.subr.mxu0 0.0
      %716 = vmatpush1.msra.mxu0 0.0
      %717 = vmatprep.subr.mxu0 0.0
      %718 = vmatpush1.msra.mxu0 0.0
      %719 = vmatprep.subr.mxu0 0.0
      %720 = vmatpush1.msra.mxu0 0.0
      %721 = vmatprep.subr.mxu0 0.0
      %722 = vmatpush1.msra.mxu0 0.0
      %723 = vmatprep.subr.mxu0 0.0
      %724 = vmatpush1.msra.mxu0 0.0
      %725 = vmatprep.subr.mxu0 0.0
      %726 = vmatpush1.msra.mxu0 0.0
      %727 = vmatprep.subr.mxu0 0.0
      %728 = vmatpush1.msra.mxu0 0.0
      %729 = vmatprep.subr.mxu0 0.0
      %730 = vmatpush1.msra.mxu0 0.0
      %731 = vmatprep.subr.mxu0 0.0
      %732 = vmatpush1.msra.mxu0 0.0
      %733 = vmatprep.subr.mxu0 0.0
      %734 = vmatpush1.msra.mxu0 0.0
      %735 = vmatprep.subr.mxu0 0.0
      %736 = vmatpush1.msra.mxu0 0.0
      %737 = vmatprep.subr.mxu0 0.0
      %738 = vmatpush1.msra.mxu0 0.0
      %739 = vmatprep.subr.mxu0 0.0
      %740 = vmatpush1.msra.mxu0 0.0
      %741 = vmatprep.subr.mxu0 0.0
      %742 = vmatpush1.msra.mxu0 0.0
      %743 = vmatprep.subr.mxu0 0.0
      %744 = vmatpush1.msra.mxu0 0.0
      %745 = vmatprep.subr.mxu0 0.0
      %746 = vmatpush1.msra.mxu0 0.0
      %747 = vmatprep.subr.mxu0 0.0
      %748 = vmatpush1.msra.mxu0 0.0
      %749 = vmatprep.subr.mxu0 0.0
      %750 = vmatpush1.msra.mxu0 0.0
      %751 = vmatprep.mubr.f32.mxu0 0.0
      %752 = vmatmul.mubr.f32.gmra.mrb[0].mxu0 %v673
      %v753 = vpop.f32.mrb[0].mxu0
      %v754 = vadd.f32 0.0, %v753
      %v755 = vpop.f32.mrb[0].mxu0
      %756 = vmatprep.mubr.f32.mxu0 0.0
      %757 = vmatmul.mubr.f32.gmra.mrb[0].mxu0 %v676
      %v758 = vpop.f32.mrb[0].mxu0
      %v759 = vadd.f32 0.0, %v758
      %v760 = vpop.f32.mrb[0].mxu0
      %761 = vmatprep.mubr.f32.mxu0 0.0
      %762 = vmatmul.mubr.f32.gmra.mrb[0].mxu0 %v679
      %v763 = vpop.f32.mrb[0].mxu0
      %v764 = vadd.f32 0.0, %v763
      %v765 = vpop.f32.mrb[0].mxu0
      %766 = vmatprep.mubr.f32.mxu0 0.0
      %767 = vmatmul.mubr.f32.gmra.mrb[0].mxu0 %v682
      %v768 = vpop.f32.mrb[0].mxu0
      %v769 = vadd.f32 0.0, %v768
      %v770 = vpop.f32.mrb[0].mxu0
      %771 = vdwg.mxu0
      %v772 = vadd.f32 %v649, %v754
      %v773 = vadd.f32 %v654, %v759
      %v774 = vadd.f32 %v659, %v764
      %v775 = vadd.f32 %v664, %v769
      %v776 = vld [vmem:[%s448] sm:$0xff]
      %v777 = vld [vmem:[%s448 + $0x8] sm:$0xff]
      %v778 = vld [vmem:[%s448 + $0x10] sm:$0xff]
      %v779 = vld [vmem:[%s448 + $0x18] sm:$0xff]
      %v780 = vld [vmem:[%s7] sm:$0xff]
      %v781 = vld [vmem:[%s7 + $0x8] sm:$0xf]
      %vm782 = vcmask 97280
      %v784 = vsel %vm782, %v776, 0
      %v787 = vsel %vm782, %v777, 0
      %v790 = vsel %vm782, %v778, 0
      %v793 = vsel %vm782, %v779, 0
      %vm795 = vcmask 1043456
      %v797 = vsel %vm795, %v781, 0
      %799 = vmatprep.subr.mxu0 0.0
      %800 = vmatpush1.msra.mxu0 %v780
      %801 = vmatprep.subr.mxu0 0.0
      %802 = vmatpush1.msra.mxu0 %v797
      %803 = vmatprep.subr.mxu0 0.0
      %804 = vmatpush1.msra.mxu0 0.0
      %805 = vmatprep.subr.mxu0 0.0
      %806 = vmatpush1.msra.mxu0 0.0
      %807 = vmatprep.subr.mxu0 0.0
      %808 = vmatpush1.msra.mxu0 0.0
      %809 = vmatprep.subr.mxu0 0.0
      %810 = vmatpush1.msra.mxu0 0.0
      %811 = vmatprep.subr.mxu0 0.0
      %812 = vmatpush1.msra.mxu0 0.0
      %813 = vmatprep.subr.mxu0 0.0
      %814 = vmatpush1.msra.mxu0 0.0
      %815 = vmatprep.subr.mxu0 0.0
      %816 = vmatpush1.msra.mxu0 0.0
      %817 = vmatprep.subr.mxu0 0.0
      %818 = vmatpush1.msra.mxu0 0.0
      %819 = vmatprep.subr.mxu0 0.0
      %820 = vmatpush1.msra.mxu0 0.0
      %821 = vmatprep.subr.mxu0 0.0
      %822 = vmatpush1.msra.mxu0 0.0
      %823 = vmatprep.subr.mxu0 0.0
      %824 = vmatpush1.msra.mxu0 0.0
      %825 = vmatprep.subr.mxu0 0.0
      %826 = vmatpush1.msra.mxu0 0.0
      %827 = vmatprep.subr.mxu0 0.0
      %828 = vmatpush1.msra.mxu0 0.0
      %829 = vmatprep.subr.mxu0 0.0
      %830 = vmatpush1.msra.mxu0 0.0
      %831 = vmatprep.subr.mxu0 0.0
      %832 = vmatpush1.msra.mxu0 0.0
      %833 = vmatprep.subr.mxu0 0.0
      %834 = vmatpush1.msra.mxu0 0.0
      %835 = vmatprep.subr.mxu0 0.0
      %836 = vmatpush1.msra.mxu0 0.0
      %837 = vmatprep.subr.mxu0 0.0
      %838 = vmatpush1.msra.mxu0 0.0
      %839 = vmatprep.subr.mxu0 0.0
      %840 = vmatpush1.msra.mxu0 0.0
      %841 = vmatprep.subr.mxu0 0.0
      %842 = vmatpush1.msra.mxu0 0.0
      %843 = vmatprep.subr.mxu0 0.0
      %844 = vmatpush1.msra.mxu0 0.0
      %845 = vmatprep.subr.mxu0 0.0
      %846 = vmatpush1.msra.mxu0 0.0
      %847 = vmatprep.subr.mxu0 0.0
      %848 = vmatpush1.msra.mxu0 0.0
      %849 = vmatprep.subr.mxu0 0.0
      %850 = vmatpush1.msra.mxu0 0.0
      %851 = vmatprep.subr.mxu0 0.0
      %852 = vmatpush1.msra.mxu0 0.0
      %853 = vmatprep.subr.mxu0 0.0
      %854 = vmatpush1.msra.mxu0 0.0
      %855 = vmatprep.subr.mxu0 0.0
      %856 = vmatpush1.msra.mxu0 0.0
      %857 = vmatprep.subr.mxu0 0.0
      %858 = vmatpush1.msra.mxu0 0.0
      %859 = vmatprep.subr.mxu0 0.0
      %860 = vmatpush1.msra.mxu0 0.0
      %861 = vmatprep.subr.mxu0 0.0
      %862 = vmatpush1.msra.mxu0 0.0
      %863 = vmatprep.mubr.f32.mxu0 0.0
      %864 = vmatmul.mubr.f32.gmra.mrb[0].mxu0 %v784
      %v865 = vpop.f32.mrb[0].mxu0
      %v866 = vadd.f32 0.0, %v865
      %v867 = vpop.f32.mrb[0].mxu0
      %868 = vmatprep.mubr.f32.mxu0 0.0
      %869 = vmatmul.mubr.f32.gmra.mrb[0].mxu0 %v787
      %v870 = vpop.f32.mrb[0].mxu0
      %v871 = vadd.f32 0.0, %v870
      %v872 = vpop.f32.mrb[0].mxu0
      %873 = vmatprep.mubr.f32.mxu0 0.0
      %874 = vmatmul.mubr.f32.gmra.mrb[0].mxu0 %v790
      %v875 = vpop.f32.mrb[0].mxu0
      %v876 = vadd.f32 0.0, %v875
      %v877 = vpop.f32.mrb[0].mxu0
      %878 = vmatprep.mubr.f32.mxu0 0.0
      %879 = vmatmul.mubr.f32.gmra.mrb[0].mxu0 %v793
      %v880 = vpop.f32.mrb[0].mxu0
      %v881 = vadd.f32 0.0, %v880
      %v882 = vpop.f32.mrb[0].mxu0
      %883 = vdwg.mxu0
      %v884 = vadd.f32 %v772, %v866
      %v885 = vadd.f32 %v773, %v871
      %v886 = vadd.f32 %v774, %v876
      %v887 = vadd.f32 %v775, %v881
      %v888 = vld [vmem:[%s8] sm:$0x1]
      %v890 = vlaneseq
      %v891 = vshrl.u32 %v890, 7
      %v892 = vsub.s32 0, %v891
      %v893 = vrot.slane %v888, %v892
      %v895 = vadd.f32 %v884, %v893
      %v896 = vadd.f32 %v885, %v893
      %v897 = vadd.f32 %v886, %v893
      %v898 = vadd.f32 %v887, %v893
      %v899 = vmax.f32 %v895, 0.0
      %v900 = vmax.f32 %v896, 0.0
      %v901 = vmax.f32 %v897, 0.0
      %v902 = vmax.f32 %v898, 0.0
      %v903 = vld [vmem:[%s9] sm:$0xff]
      %v904 = vld [vmem:[%s9 + $0x8] sm:$0xff]
      %v905 = vld [vmem:[%s9 + $0x10] sm:$0xff]
      %v906 = vld [vmem:[%s9 + $0x18] sm:$0xff]
      %v907 = vld [vmem:[%s9 + $0x20] sm:$0xff]
      %v908 = vld [vmem:[%s9 + $0x28] sm:$0xff]
      %v909 = vld [vmem:[%s9 + $0x30] sm:$0xff]
      %v910 = vld [vmem:[%s9 + $0x38] sm:$0xff]
      %v911 = vld [vmem:[%s9 + $0x40] sm:$0xff]
      %v912 = vld [vmem:[%s9 + $0x48] sm:$0xff]
      %v913 = vld [vmem:[%s9 + $0x50] sm:$0xff]
      %v914 = vld [vmem:[%s9 + $0x58] sm:$0xff]
      %v915 = vld [vmem:[%s9 + $0x60] sm:$0xff]
      %v916 = vld [vmem:[%s9 + $0x68] sm:$0xff]
      %v917 = vld [vmem:[%s9 + $0x70] sm:$0xff]
      %v918 = vld [vmem:[%s9 + $0x78] sm:$0xff]
      %v919 = vld [vmem:[%s10] sm:$0x1]
      %v921 = vlaneseq
      %v922 = vshrl.u32 %v921, 7
      %v923 = vsub.s32 0, %v922
      %v924 = vrot.slane %v919, %v923
      %926 = vmatprep.subr.mxu0 0.0
      %927 = vmatpush1.msra.mxu0 %v903
      %928 = vmatprep.subr.mxu0 0.0
      %929 = vmatpush1.msra.mxu0 %v904
      %930 = vmatprep.subr.mxu0 0.0
      %931 = vmatpush1.msra.mxu0 %v905
      %932 = vmatprep.subr.mxu0 0.0
      %933 = vmatpush1.msra.mxu0 %v906
      %934 = vmatprep.subr.mxu0 0.0
      %935 = vmatpush1.msra.mxu0 %v907
      %936 = vmatprep.subr.mxu0 0.0
      %937 = vmatpush1.msra.mxu0 %v908
      %938 = vmatprep.subr.mxu0 0.0
      %939 = vmatpush1.msra.mxu0 %v909
      %940 = vmatprep.subr.mxu0 0.0
      %941 = vmatpush1.msra.mxu0 %v910
      %942 = vmatprep.subr.mxu0 0.0
      %943 = vmatpush1.msra.mxu0 %v911
      %944 = vmatprep.subr.mxu0 0.0
      %945 = vmatpush1.msra.mxu0 %v912
      %946 = vmatprep.subr.mxu0 0.0
      %947 = vmatpush1.msra.mxu0 %v913
      %948 = vmatprep.subr.mxu0 0.0
      %949 = vmatpush1.msra.mxu0 %v914
      %950 = vmatprep.subr.mxu0 0.0
      %951 = vmatpush1.msra.mxu0 %v915
      %952 = vmatprep.subr.mxu0 0.0
      %953 = vmatpush1.msra.mxu0 %v916
      %954 = vmatprep.subr.mxu0 0.0
      %955 = vmatpush1.msra.mxu0 %v917
      %956 = vmatprep.subr.mxu0 0.0
      %957 = vmatpush1.msra.mxu0 %v918
      %958 = vmatprep.subr.mxu0 0.0
      %959 = vmatpush1.msra.mxu0 0.0
      %960 = vmatprep.subr.mxu0 0.0
      %961 = vmatpush1.msra.mxu0 0.0
      %962 = vmatprep.subr.mxu0 0.0
      %963 = vmatpush1.msra.mxu0 0.0
      %964 = vmatprep.subr.mxu0 0.0
      %965 = vmatpush1.msra.mxu0 0.0
      %966 = vmatprep.subr.mxu0 0.0
      %967 = vmatpush1.msra.mxu0 0.0
      %968 = vmatprep.subr.mxu0 0.0
      %969 = vmatpush1.msra.mxu0 0.0
      %970 = vmatprep.subr.mxu0 0.0
      %971 = vmatpush1.msra.mxu0 0.0
      %972 = vmatprep.subr.mxu0 0.0
      %973 = vmatpush1.msra.mxu0 0.0
      %974 = vmatprep.subr.mxu0 0.0
      %975 = vmatpush1.msra.mxu0 0.0
      %976 = vmatprep.subr.mxu0 0.0
      %977 = vmatpush1.msra.mxu0 0.0
      %978 = vmatprep.subr.mxu0 0.0
      %979 = vmatpush1.msra.mxu0 0.0
      %980 = vmatprep.subr.mxu0 0.0
      %981 = vmatpush1.msra.mxu0 0.0
      %982 = vmatprep.subr.mxu0 0.0
      %983 = vmatpush1.msra.mxu0 0.0
      %984 = vmatprep.subr.mxu0 0.0
      %985 = vmatpush1.msra.mxu0 0.0
      %986 = vmatprep.subr.mxu0 0.0
      %987 = vmatpush1.msra.mxu0 0.0
      %988 = vmatprep.subr.mxu0 0.0
      %989 = vmatpush1.msra.mxu0 0.0
      %990 = vmatprep.mubr.f32.mxu0 0.0
      %991 = vmatmul.mubr.f32.gmra.mrb[0].mxu0 %v899
      %v992 = vpop.f32.mrb[0].mxu0
      %v993 = vadd.f32 %v924, %v992
      %v994 = vpop.f32.mrb[0].mxu0
      %995 = vmatprep.mubr.f32.mxu0 0.0
      %996 = vmatmul.mubr.f32.gmra.mrb[0].mxu0 %v900
      %v997 = vpop.f32.mrb[0].mxu0
      %v998 = vadd.f32 %v924, %v997
      %v999 = vpop.f32.mrb[0].mxu0
      %1000 = vmatprep.mubr.f32.mxu0 0.0
      %1001 = vmatmul.mubr.f32.gmra.mrb[0].mxu0 %v901
      %v1002 = vpop.f32.mrb[0].mxu0
      %v1003 = vadd.f32 %v924, %v1002
      %v1004 = vpop.f32.mrb[0].mxu0
      %1005 = vmatprep.mubr.f32.mxu0 0.0
      %1006 = vmatmul.mubr.f32.gmra.mrb[0].mxu0 %v902
      %v1007 = vpop.f32.mrb[0].mxu0
      %v1008 = vadd.f32 %v924, %v1007
      %v1009 = vpop.f32.mrb[0].mxu0
      %1010 = vdwg.mxu0
      %v1011 = vmax.f32 %v993, 0.0
      %v1012 = vmax.f32 %v998, 0.0
      %v1013 = vmax.f32 %v1003, 0.0
      %v1014 = vmax.f32 %v1008, 0.0
      %vm1015 = vcmask 261120
      %1016 = vst.msk [vmem:[%s454] sm:$0xff] %vm1015, %v1011
      %1017 = vst.msk [vmem:[%s454 + $0x8] sm:$0xff] %vm1015, %v1012
      %1018 = vst.msk [vmem:[%s454 + $0x10] sm:$0xff] %vm1015, %v1013
      %1019 = vst.msk [vmem:[%s454 + $0x18] sm:$0xff] %vm1015, %v1014
      %s1020 = smul.u32 4, %s22
      %p1021 = scmp.lt.s32.totalorder %s1020, 7
      %s1022 = scalar_select %p1021, %s1020, 7
      %s1023 = smul.addr %s1022, 8
      %s1024 = scalar_lea.vmem %s11, %s1023
      // Predicated region
      $region65: #{tpu_custom_call.1} parent=63 // pred_check
        %p1025 = pneg %p291
      $region66: #{tpu_custom_call.1} parent=63 // pred_check_branch
        %1027 = sbr.rel (%p1025) target = $region68
      $region67: #{tpu_custom_call.1} parent=63 // pred_region
        %s1028 = smul.u32 4, %s22
      $region68: #{tpu_custom_call.1} parent=63 // pred_fallthru
        _
    $region64: #{tpu_custom_call.1} parent=5 // pred_fallthru
      _
    %p1029 = scmp.le.s32.totalorder 2, %s17
    // Predicated region
    $region69: #{tpu_custom_call.1} parent=5 // pred_check
      %p1030 = pneg %p1029
    $region70: #{tpu_custom_call.1} parent=5 // pred_check_branch
      %1032 = sbr.rel (%p1030) target = $region72
    $region71: #{tpu_custom_call.1} parent=5 // pred_region
      %s1033 = ssub.s32 %s17, 2
      // Predicated region
      $region73: #{tpu_custom_call.1} parent=71 // pred_check
        %p1034 = pneg %p297
      $region74: #{tpu_custom_call.1} parent=71 // pred_check_branch
        %1036 = sbr.rel (%p1034) target = $region76
      $region75: #{tpu_custom_call.1} parent=71 // pred_region
        %s1037 = smul.u32 4, %s23
        %p1038 = scmp.lt.s32.totalorder %s1037, 7
        %s1039 = scalar_select %p1038, %s1037, 7
        %s1040 = smul.addr %s1039, 8
        %s1041 = scalar_lea.vmem %s11, %s1040
      $region76: #{tpu_custom_call.1} parent=71 // pred_fallthru
        _
    $region72: #{tpu_custom_call.1} parent=5 // pred_fallthru
      _
  $region6: #{tpu_custom_call.1} parent=0 // loop_footer
    %s21 = sadd.s32 1, %s17
  $region7: #{tpu_custom_call.1} parent=0 // loop_footer_branch
    %16 = sbr.rel target = $region3
  $region8: #{tpu_custom_call.1} parent=0 // loop_exit
    _

</llo_original>
